<compile_context>
chip_gen: v5e
topology: v5e:2x2
jax: 0.10.0
libtpu: 0.0.40
codegen_flags: <defaults>
</compile_context>

<pallas_src>
import math

import jax
import jax.numpy as jnp
from jax import lax
from jax.experimental import pallas as pl
from jax.experimental.pallas import tpu as pltpu

_EPS = 1e-12            # torch.nn.functional.normalize default eps
_EPS_SQ = _EPS * _EPS   # 1e-24 is a normal f32, so rsqrt(max(ssq, eps^2)) == 1/max(norm, eps)


def _cosine_kernel(x_ref, w_ref, inv_x_ref, inv_w_ref, o_ref):
    # Unnormalized matmul at native operand dtype (bf16-friendly MXU), f32
    # accumulation, then one cheap O(TB*TC) post-scale by the precomputed
    # row / column inverse norms.
    acc = jnp.dot(x_ref[...], w_ref[...], preferred_element_type=jnp.float32)
    o_ref[...] = (acc * inv_x_ref[...] * inv_w_ref[...]).astype(o_ref.dtype)


def _align_tile(n: int, target: int, align: int) -> int:
    """Tile for a dim of size n: full dim if n <= target; else prefer the largest
    multiple of `align` <= target that divides n; else the largest multiple of
    `align` <= target (edge block is padded/masked by the cdiv grid)."""
    if n <= target:
        return n
    t = (target // align) * align
    for cand in range(t, align - 1, -align):
        if n % cand == 0:
            return cand
    return t


def _vmem_capacity_bytes() -> int:
    try:
        return int(pltpu.get_tpu_info().vmem_capacity_bytes)
    except Exception:
        return 64 << 20  # conservative fallback (v7x per-core VMEM)


def _step_bytes(tb: int, tc: int, e: int, x_it: int, w_it: int, o_it: int) -> int:
    # Conservative: assume every operand block is double-buffered by the pipeline.
    return (2 * tb * e * x_it + 2 * e * tc * w_it + 2 * tb * tc * o_it
            + 2 * (tb + tc) * 4)


def _choose_tiles(b, e, c, x_it, w_it, o_it, budget):
    big = budget >= (48 << 20)          # v5e/v6e-class VMEM -> bigger tiles
    tb_t = 512 if big else 256
    tc_t = 1024 if big else 512
    while True:
        tb = _align_tile(b, tb_t, 8)
        tc = _align_tile(c, tc_t, 128)
        need = _step_bytes(tb, tc, e, x_it, w_it, o_it)
        if need <= budget or (tb_t <= 8 and tc_t <= 128):
            return tb, tc, need
        # E is untiled, so the (E,TC)/(TB,E) slabs dominate; shrink the larger one.
        if tc_t > 128 and (tc_t * w_it >= tb_t * x_it or tb_t <= 8):
            tc_t //= 2
        else:
            tb_t //= 2


def cosine_component(x: jax.Array, w: jax.Array, inv_w: jax.Array | None = None) -> jax.Array:
    """x: (B, E), w: (E, C) -> (B, C) cosine-similarity logits.

    inv_w: optional precomputed (1, C) f32 inverse column norms of w (constant
    across forward calls for a fixed weight; pass it to skip recomputation).
    """
    B, E = x.shape
    E2, C = w.shape
    assert E == E2

    # Tiny side inputs: one cheap XLA reduction each, always f32.
    inv_x = lax.rsqrt(jnp.maximum(
        jnp.sum(jnp.square(x.astype(jnp.float32)), axis=1, keepdims=True), _EPS_SQ))
    if inv_w is None:
        inv_w = lax.rsqrt(jnp.maximum(
            jnp.sum(jnp.square(w.astype(jnp.float32)), axis=0, keepdims=True), _EPS_SQ))

    x_it = x.dtype.itemsize
    w_it = w.dtype.itemsize
    o_it = x.dtype.itemsize

    cap = _vmem_capacity_bytes()
    budget = int(cap * 0.55)            # pipeline-buffer budget; headroom for compiler scratch
    TB, TC, need = _choose_tiles(B, E, C, x_it, w_it, o_it, budget)
    # Note: for an E so large that even (8,E)/(E,128) slabs exceed VMEM, a
    # reduction grid axis over E with an f32 accumulator scratch would be needed.

    nB = pl.cdiv(B, TB)
    nC = pl.cdiv(C, TC)

    # Operand residency by re-streamed HBM traffic:
    #   class-outer -> W resident per outer step, x re-streamed nC times
    #   batch-outer -> x resident per outer step, W re-streamed nB times
    if nC * B * E * x_it <= nB * E * C * w_it:
        grid = (nC, nB)                                      # j outer, i inner
        x_map = lambda j, i: (i, 0)
        w_map = lambda j, i: (0, j)
        ix_map = lambda j, i: (i, 0)
        iw_map = lambda j, i: (0, j)
        o_map = lambda j, i: (i, j)
    else:
        grid = (nB, nC)                                      # i outer, j inner
        x_map = lambda i, j: (i, 0)
        w_map = lambda i, j: (0, j)
        ix_map = lambda i, j: (i, 0)
        iw_map = lambda i, j: (0, j)
        o_map = lambda i, j: (i, j)

    vmem_limit = int(min(int(cap * 0.75), max(2 * need, 16 << 20)))

    return pl.pallas_call(
        _cosine_kernel,
        out_shape=jax.ShapeDtypeStruct((B, C), x.dtype),
        grid=grid,
        in_specs=[
            pl.BlockSpec((TB, E), x_map),
            pl.BlockSpec((E, TC), w_map),
            pl.BlockSpec((TB, 1), ix_map),
            pl.BlockSpec((1, TC), iw_map),
        ],
        out_specs=pl.BlockSpec((TB, TC), o_map),
        compiler_params=pltpu.CompilerParams(
            # Norms are precomputed, so there is no sequential dependency:
            # both axes parallel -> megacore sharding on v7x.
            dimension_semantics=("parallel", "parallel"),
            vmem_limit_bytes=vmem_limit,
        ),
    )(x, w, inv_x, inv_w)


def _reference(x, w):
    x_n = x / jnp.maximum(jnp.linalg.norm(x, axis=1, keepdims=True), _EPS)
    w_n = w / jnp.maximum(jnp.linalg.norm(w, axis=0, keepdims=True), _EPS)
    return x_n @ w_n


if __name__ == "__main__":
    embedding_size = 32
    n_classes = 128
    batch = 8

    key = jax.random.PRNGKey(0)
    kx, kw = jax.random.split(key)

    x = jax.random.normal(kx, (batch, embedding_size), dtype=jnp.float32)

    # Kaiming-uniform init for W (embedding_size, n_classes):
    # fan_in = size(1) = n_classes, gain = sqrt(2), bound = sqrt(6 / fan_in).
    bound = math.sqrt(6.0 / n_classes)
    W = jax.random.uniform(
        kw, (embedding_size, n_classes), dtype=jnp.float32,
        minval=-bound, maxval=bound,
    )

    out = cosine_component(x, W)
    jax.block_until_ready(out)

    ref = _reference(x, W)
    assert out.shape == (batch, n_classes)
    assert jnp.allclose(out, ref, atol=1e-5, rtol=1e-5), "mismatch vs reference"
    print("KERNEL_OK")
</pallas_src>

<mosaic_0001>
module attributes {stable_mosaic.version = 11 : i64} {
  func.func @_cosine_kernel(%arg0: i32, %arg1: i32, %arg2: memref<8x32xf32, #tpu.memory_space<vmem>>, %arg3: memref<32x128xf32, #tpu.memory_space<vmem>>, %arg4: memref<8x1xf32, #tpu.memory_space<vmem>>, %arg5: memref<1x128xf32, #tpu.memory_space<vmem>>, %arg6: memref<8x128xf32, #tpu.memory_space<vmem>>) attributes {dimension_semantics = [#tpu.dimension_semantics<parallel>, #tpu.dimension_semantics<parallel>], iteration_bounds = array<i64: 1, 1>, scalar_prefetch = 0 : i64, scratch_operands = 0 : i64, tpu.core_type = #tpu.core_type<tc>, window_params = [{transform_indices = @transform_0, window_bounds = array<i64: 8, 32>}, {transform_indices = @transform_1, window_bounds = array<i64: 32, 128>}, {transform_indices = @transform_2, window_bounds = array<i64: 8, 1>}, {transform_indices = @transform_3, window_bounds = array<i64: 1, 128>}, {transform_indices = @transform_4, window_bounds = array<i64: 8, 128>}]} {
    %c0 = arith.constant 0 : index
    %c0_0 = arith.constant 0 : index
    %0 = vector.load %arg2[%c0, %c0_0] : memref<8x32xf32, #tpu.memory_space<vmem>>, vector<8x32xf32>
    %c0_1 = arith.constant 0 : index
    %c0_2 = arith.constant 0 : index
    %1 = vector.load %arg3[%c0_1, %c0_2] : memref<32x128xf32, #tpu.memory_space<vmem>>, vector<32x128xf32>
    %cst = arith.constant dense<0.000000e+00> : vector<8x128xf32>
    %2 = tpu.matmul %0, %1, %cst {dimension_numbers = #tpu.dot_dimension_numbers<[1], [0], [0], [1], [0, 0, 1, 1], [], []>} : vector<8x32xf32>, vector<32x128xf32>, vector<8x128xf32> -> vector<8x128xf32>
    %c0_3 = arith.constant 0 : index
    %c0_4 = arith.constant 0 : index
    %3 = vector.load %arg4[%c0_3, %c0_4] : memref<8x1xf32, #tpu.memory_space<vmem>>, vector<8x1xf32>
    %4 = vector.broadcast %3 : vector<8x1xf32> to vector<8x128xf32>
    %5 = arith.mulf %2, %4 : vector<8x128xf32>
    %c0_5 = arith.constant 0 : index
    %c0_6 = arith.constant 0 : index
    %6 = vector.load %arg5[%c0_5, %c0_6] : memref<1x128xf32, #tpu.memory_space<vmem>>, vector<1x128xf32>
    %7 = vector.broadcast %6 : vector<1x128xf32> to vector<8x128xf32>
    %8 = arith.mulf %5, %7 : vector<8x128xf32>
    %c0_7 = arith.constant 0 : index
    %c0_8 = arith.constant 0 : index
    %9 = vector.load %arg6[%c0_7, %c0_8] : memref<8x128xf32, #tpu.memory_space<vmem>>, vector<8x128xf32>
    tpu.vector_store %arg6[%c0_7, %c0_8], %8 {strides = array<i32>} : memref<8x128xf32, #tpu.memory_space<vmem>>, vector<8x128xf32>,
    return
  }
  func.func @transform_0(%arg0: i32, %arg1: i32) -> (i32, i32) {
    %c0_i32 = arith.constant 0 : i32
    %c0_i32_0 = arith.constant 0 : i32
    return %arg1, %c0_i32 : i32, i32
  }
  func.func @transform_1(%arg0: i32, %arg1: i32) -> (i32, i32) {
    %c0_i32 = arith.constant 0 : i32
    %c0_i32_0 = arith.constant 0 : i32
    return %c0_i32, %arg0 : i32, i32
  }
  func.func @transform_2(%arg0: i32, %arg1: i32) -> (i32, i32) {
    %c0_i32 = arith.constant 0 : i32
    %c0_i32_0 = arith.constant 0 : i32
    return %arg1, %c0_i32 : i32, i32
  }
  func.func @transform_3(%arg0: i32, %arg1: i32) -> (i32, i32) {
    %c0_i32 = arith.constant 0 : i32
    %c0_i32_0 = arith.constant 0 : i32
    return %c0_i32, %arg0 : i32, i32
  }
  func.func @transform_4(%arg0: i32, %arg1: i32) -> (i32, i32) {
    %c0_i32 = arith.constant 0 : i32
    return %arg1, %arg0 : i32, i32
  }
}

</mosaic_0001>

<llo_original>
// kernel: tpu_custom_call.1
$region0: #{tpu_custom_call.1}
  #allocation0 [shape = 'u32[]', space=smem, size = 0x4, offset = 0x4, fixed_abs, tag = 'smem constant byte address 0x4 - core index']
  #allocation1 [shape = 'u32[72,128]{1,0:T(1,128)}', space=vmem, size = 0x9000, scoped, tag = 'internal scratch']
  %s0 = inlined_call_operand.vmem [shape: f32[8,32], index: 0, kind: input, shape index: {}]
  %s1 = inlined_call_operand.hbm [shape: f32[32,128], index: 1, kind: input, shape index: {}]
  %s2 = inlined_call_operand.vmem [shape: f32[8,1], index: 2, kind: input, shape index: {}]
  %s3 = inlined_call_operand.vmem [shape: f32[1,128], index: 3, kind: input, shape index: {}]
  %s4 = inlined_call_operand.hbm [shape: f32[8,128], index: 4, kind: output, shape index: {}]
  %s5 = sld [smem:[#allocation0]]
  $region30: #{tpu_custom_call.1} parent=0
    _
  %s7 = ssub.s32 1, %s5
  %s8 = scalar_select 0, %s7, %s5
  $region1: #{tpu_custom_call.1} parent=0
    #allocation2 [shape = 'u8[16384]{0}', space=vmem, size = 0x4000, scoped, tag = 'input window, operand 1, single buffered']
    #allocation3 [shape = 's32[1]{0}', space=sflag, size = 0x4, scoped, tag = 'scoped memory for tpu_custom_call.1']
    #allocation4 [shape = 's32[1]{0}', space=sflag, size = 0x4, scoped, tag = 'scoped memory for tpu_custom_call.1']
    #allocation5 [shape = 'u8[4096]{0}', space=vmem, size = 0x1000, scoped, tag = 'output window, operand 0, single buffered']
    %9 = vsyncpa [#allocation3], 0
    %10 = vsyncpa [#allocation4], 0
    // Predicated region
    $region2: #{tpu_custom_call.1} parent=1 // pred_check
      _
    $region3: #{tpu_custom_call.1} parent=1 // pred_check_branch
      %12 = sbr.rel (0) target = $region5
    $region4: #{tpu_custom_call.1} parent=1 // pred_region
      _
    $region5: #{tpu_custom_call.1} parent=1 // pred_fallthru
      _
    // Predicated region
    $region6: #{tpu_custom_call.1} parent=1 // pred_check
      _
    $region7: #{tpu_custom_call.1} parent=1 // pred_check_branch
      %14 = sbr.rel (0) target = $region9
    $region8: #{tpu_custom_call.1} parent=1 // pred_region
      %16 = vsyncadd [#allocation3], 0
      %s17 = sshll.u32 %s1, 4
      %s18 = int_to_ptr.hbm [resolvable:$true] %s17
      %s19 = sshll.u32 [#allocation2], 4
      %s20 = int_to_ptr.vmem [resolvable:$true] %s19
      %25 = dma.hbm_to_vmem [thread:$0]  %s18, 512, %s20, [#allocation3], 128, 128, 8
    $region9: #{tpu_custom_call.1} parent=1 // pred_fallthru
      _
    // Predicated region
    $region10: #{tpu_custom_call.1} parent=1 // pred_check
      _
    $region11: #{tpu_custom_call.1} parent=1 // pred_check_branch
      %27 = sbr.rel (0) target = $region13
    $region12: #{tpu_custom_call.1} parent=1 // pred_region
      _
    $region13: #{tpu_custom_call.1} parent=1 // pred_fallthru
      _
    // Predicated region
    $region14: #{tpu_custom_call.1} parent=1 // pred_check
      _
    $region15: #{tpu_custom_call.1} parent=1 // pred_check_branch
      %29 = sbr.rel (0) target = $region17
    $region16: #{tpu_custom_call.1} parent=1 // pred_region
      _
    $region17: #{tpu_custom_call.1} parent=1 // pred_fallthru
      _
    // Predicated region
    $region18: #{tpu_custom_call.1} parent=1 // pred_check
      _
    $region19: #{tpu_custom_call.1} parent=1 // pred_check_branch
      %31 = sbr.rel (0) target = $region21
    $region20: #{tpu_custom_call.1} parent=1 // pred_region
      %33 = dma.done [#allocation3], 512
    $region21: #{tpu_custom_call.1} parent=1 // pred_fallthru
      _
    %v34 = vld [vmem:[%s0] sm:$0xff]
    %v35 = vld [vmem:[#allocation2] sm:$0xff]
    %v36 = vld [vmem:[#allocation2 + $0x8] sm:$0xff]
    %v37 = vld [vmem:[#allocation2 + $0x10] sm:$0xff]
    %v38 = vld [vmem:[#allocation2 + $0x18] sm:$0xff]
    %vm39 = vcmask 261120
    %v41 = vsel %vm39, %v34, 0
    %43 = vmatpush.msra.mxu0 0.0
    %44 = vmatpush.msra.mxu0 0.0
    %45 = vmatpush.msra.mxu0 0.0
    %46 = vmatpush.msra.mxu0 0.0
    %47 = vmatpush.msra.mxu0 0.0
    %48 = vmatpush.msra.mxu0 0.0
    %49 = vmatpush.msra.mxu0 0.0
    %50 = vmatpush.msra.mxu0 0.0
    %51 = vmatpush.msra.mxu0 0.0
    %52 = vmatpush.msra.mxu0 0.0
    %53 = vmatpush.msra.mxu0 0.0
    %54 = vmatpush.msra.mxu0 0.0
    %55 = vmatpush.msra.mxu0 %v38
    %56 = vmatpush.msra.mxu0 %v37
    %57 = vmatpush.msra.mxu0 %v36
    %58 = vmatpush.msra.mxu0 %v35
    %59 = vmatmul.f32.gmra.mxu0 %v41
    %v60 = vpop.f32.mrf.mxu0
    %v61 = vadd.f32 0.0, %v60
    %62 = vdwg.mxu0
    %v63 = vld [vmem:[%s2] sm:$0xff]
    %65 = vset.pattern.permute.xlu0 0
    %66 = vperm.xlu0 %65, %v63
    %v67 = vpop.permute.xlu0 %66
    %v69 = vmul.f32 %v61, %v67
    %v70 = vld [vmem:[%s3] sm:$0x1]
    %v72 = vperm.slane %v70, 0
    %v74 = vmul.f32 %v69, %v72
    %75 = vst [vmem:[#allocation5] sm:$0xff] %v74
    // Predicated region
    $region22: #{tpu_custom_call.1} parent=1 // pred_check
      _
    $region23: #{tpu_custom_call.1} parent=1 // pred_check_branch
      %77 = sbr.rel (0) target = $region25
    $region24: #{tpu_custom_call.1} parent=1 // pred_region
      %79 = vsyncadd [#allocation4], 0
      %s81 = sshll.u32 [#allocation5], 4
      %s82 = int_to_ptr.vmem [resolvable:$true] %s81
      %s83 = sshll.u32 %s4, 4
      %s84 = int_to_ptr.hbm [resolvable:$true] %s83
      %86 = dma.vmem_to_hbm [thread:$0]  %s82, 128, %s84, [#allocation4]
    $region25: #{tpu_custom_call.1} parent=1 // pred_fallthru
      _
    // Predicated region
    $region26: #{tpu_custom_call.1} parent=1 // pred_check
      _
    $region27: #{tpu_custom_call.1} parent=1 // pred_check_branch
      %88 = sbr.rel (0) target = $region29
    $region28: #{tpu_custom_call.1} parent=1 // pred_region
      %90 = dma.done [#allocation4], 128
    $region29: #{tpu_custom_call.1} parent=1 // pred_fallthru
      _
    %91 = vsyncpa [#allocation3], 1
    %92 = vsyncpa [#allocation4], 1

</llo_original>
